<compile_context>
chip_gen: v5e
topology: v5e:2x2
jax: 0.10.0
libtpu: 0.0.40
codegen_flags: <defaults>
</compile_context>

<pallas_src>
import functools

import jax
import jax.numpy as jnp
from jax.experimental import pallas as pl
from jax.experimental.pallas import tpu as pltpu

_LANE = 128


def _as_i32(v):
    """Reinterpret a 32-bit pattern (Python int) as a signed int32 value."""
    v &= 0xFFFFFFFF
    return v - (1 << 32) if v >= (1 << 31) else v


_GOLDEN = _as_i32(0x9E3779B9)
_MIX1 = _as_i32(0x85EBCA6B)
_MIX2 = _as_i32(0xC2B2AE35)
_SIGN = _as_i32(0x80000000)


def _lsr(v, k):
    """Logical right shift on int32 (arithmetic shift + mask of sign bits)."""
    return (v >> k) & ((1 << (32 - k)) - 1)


def _dropout_kernel(seed_ref, x_ref, o_ref, *, signed_threshold, inv_rate,
                    block_elems, width):
    shape = x_ref.shape

    # Global flat element index: the "counter" for the stateless RNG.
    base = pl.program_id(0) * block_elems
    row = jax.lax.broadcasted_iota(jnp.int32, shape, 0)
    col = jax.lax.broadcasted_iota(jnp.int32, shape, 1)
    idx = base + row * width + col

    # murmur3 fmix32 over (index, seed) -> 32 uniform bits per element.
    h = idx ^ (seed_ref[0] * _GOLDEN)
    h = h ^ _lsr(h, 16)
    h = h * _MIX1
    h = h ^ _lsr(h, 13)
    h = h * _MIX2
    h = h ^ _lsr(h, 16)

    # keep  <=>  (uniform uint32 bits) >= rate * 2**32, i.e. rate <= U[0,1).
    # Done as a signed compare after flipping the sign bit (unsigned order
    # maps to signed order) so only plain int32 ops are needed.
    keep = (h ^ _SIGN) >= signed_threshold

    x = x_ref[...]
    scaled = x * jnp.asarray(inv_rate, dtype=x.dtype)  # fold 1/rate into one mul
    o_ref[...] = jnp.where(keep, scaled, jnp.zeros_like(scaled))


def _choose_layout(total, itemsize):
    """Pick (width, rows, block_rows, pad) for a lane-dense 2-D slab."""
    # Widest last dim (multiple of 128) that divides total; else pad to 128.
    for width in (4096, 2048, 1024, 512, 256, 128):
        if total % width == 0:
            padded = total
            break
    else:
        width = _LANE
        padded = -(-total // _LANE) * _LANE
    rows = padded // width

    # ~1 MiB per block: reaches the HBM-roofline plateau on v5e/v6e and keeps
    # double-buffered in+out well under v7x's smaller (64 MiB) VMEM.
    target_rows = max(8, (1 << 20) // (width * itemsize))
    if rows <= target_rows:
        block_rows = rows  # single block along rows (full-extent dim is legal)
    else:
        block_rows = 8
        for r in range(8, target_rows + 1, 8):
            if rows % r == 0:
                block_rows = r
    return width, rows, block_rows, padded - total


def dropout_forward(x, rate, is_t, *, seed=0):
    """Pallas dropout matching the PyTorch module's forward semantics."""
    assert 0 <= rate <= 1
    if not is_t:
        return x

    orig_shape = x.shape
    total = x.size
    itemsize = jnp.dtype(x.dtype).itemsize
    width, rows, block_rows, pad = _choose_layout(total, itemsize)

    flat = x.reshape(-1)
    if pad:
        flat = jnp.pad(flat, (0, pad))
    slab = flat.reshape(rows, width)

    # Reference semantics: keep with prob (1 - rate), scale survivors by 1/rate.
    # rate == 0 keeps everything and scales by inf (exactly x * 1 / 0, as in the
    # reference); rate == 1 threshold is clamped to 2**32 - 1 (keep prob 2^-32).
    inv_rate = float("inf") if rate == 0.0 else 1.0 / float(rate)
    threshold = min(int(round(float(rate) * (1 << 32))), (1 << 32) - 1)
    signed_threshold = _as_i32(threshold ^ 0x80000000)

    kernel = functools.partial(
        _dropout_kernel,
        signed_threshold=signed_threshold,
        inv_rate=inv_rate,
        block_elems=block_rows * width,
        width=width,
    )

    grid = (pl.cdiv(rows, block_rows),)
    seed_arr = jnp.array([seed], dtype=jnp.int32)

    out_slab = pl.pallas_call(
        kernel,
        out_shape=jax.ShapeDtypeStruct((rows, width), x.dtype),
        grid_spec=pltpu.PrefetchScalarGridSpec(
            num_scalar_prefetch=1,
            grid=grid,
            in_specs=[pl.BlockSpec((block_rows, width), lambda i, seed: (i, 0))],
            out_specs=pl.BlockSpec((block_rows, width), lambda i, seed: (i, 0)),
        ),
        compiler_params=pltpu.CompilerParams(
            # Tiles are fully independent -> shard grid across v7x's 2 TCs.
            dimension_semantics=("parallel",),
        ),
    )(seed_arr, slab)

    out = out_slab.reshape(-1)
    if pad:
        out = out[:total]
    return out.reshape(orig_shape)


if __name__ == "__main__":
    key = jax.random.PRNGKey(0)
    # NCHW input, small shapes: batch=2, channels=4, spatial=16x16.
    x = jax.random.normal(key, (2, 4, 16, 16), dtype=jnp.float32)
    rate = 0.5

    # Training path (kernel runs, applies mask and 1/rate scaling).
    y_train = jax.block_until_ready(dropout_forward(x, rate, is_t=True, seed=1234))
    # Inference path (identity, as in the reference module).
    y_eval = jax.block_until_ready(dropout_forward(x, rate, is_t=False))

    # Sanity checks: surviving elements equal x / rate, dropped elements are 0,
    # keep fraction is sane, eval path is identity.
    kept = y_train != 0
    assert jnp.allclose(jnp.where(kept, y_train, 0.0),
                        jnp.where(kept, x / rate, 0.0), atol=1e-5, rtol=1e-5)
    frac = float(jnp.mean(kept.astype(jnp.float32)))
    assert 0.25 < frac < 0.75, f"suspicious keep fraction {frac}"
    assert jnp.allclose(y_eval, x)

    print("KERNEL_OK")
</pallas_src>

<mosaic_0001>
module attributes {stable_mosaic.version = 11 : i64} {
  func.func @_dropout_kernel(%arg0: i32, %arg1: memref<1xi32, #tpu.memory_space<smem>>, %arg2: memref<1x2048xf32, #tpu.memory_space<vmem>>, %arg3: memref<1x2048xf32, #tpu.memory_space<vmem>>) attributes {dimension_semantics = [#tpu.dimension_semantics<parallel>], iteration_bounds = array<i64: 1>, scalar_prefetch = 1 : i64, scratch_operands = 0 : i64, tpu.core_type = #tpu.core_type<tc>, window_params = [{transform_indices = @transform_0, window_bounds = array<i64: 1, 2048>}, {transform_indices = @transform_1, window_bounds = array<i64: 1, 2048>}]} {
    %c2048_i32 = arith.constant 2048 : i32
    %0 = arith.muli %arg0, %c2048_i32 : i32
    %1 = tpu.iota {dimensions = array<i32: 0>} : vector<1x2048xi32>
    %2 = tpu.iota {dimensions = array<i32: 1>} : vector<1x2048xi32>
    %c2048_i32_0 = arith.constant 2048 : i32
    %3 = vector.broadcast %c2048_i32_0 : i32 to vector<1x2048xi32>
    %4 = arith.muli %1, %3 : vector<1x2048xi32>
    %5 = vector.broadcast %0 : i32 to vector<1x2048xi32>
    %6 = arith.addi %5, %4 : vector<1x2048xi32>
    %7 = arith.addi %6, %2 : vector<1x2048xi32>
    %c0 = arith.constant 0 : index
    %8 = memref.load %arg1[%c0] : memref<1xi32, #tpu.memory_space<smem>>
    %c-1640531527_i32 = arith.constant -1640531527 : i32
    %9 = arith.muli %8, %c-1640531527_i32 : i32
    %10 = vector.broadcast %9 : i32 to vector<1x2048xi32>
    %11 = arith.xori %7, %10 : vector<1x2048xi32>
    %c16_i32 = arith.constant 16 : i32
    %12 = vector.broadcast %c16_i32 : i32 to vector<1x2048xi32>
    %13 = arith.shrsi %11, %12 : vector<1x2048xi32>
    %c65535_i32 = arith.constant 65535 : i32
    %14 = vector.broadcast %c65535_i32 : i32 to vector<1x2048xi32>
    %15 = arith.andi %13, %14 : vector<1x2048xi32>
    %16 = arith.xori %11, %15 : vector<1x2048xi32>
    %c-2048144789_i32 = arith.constant -2048144789 : i32
    %17 = vector.broadcast %c-2048144789_i32 : i32 to vector<1x2048xi32>
    %18 = arith.muli %16, %17 : vector<1x2048xi32>
    %c13_i32 = arith.constant 13 : i32
    %19 = vector.broadcast %c13_i32 : i32 to vector<1x2048xi32>
    %20 = arith.shrsi %18, %19 : vector<1x2048xi32>
    %c524287_i32 = arith.constant 524287 : i32
    %21 = vector.broadcast %c524287_i32 : i32 to vector<1x2048xi32>
    %22 = arith.andi %20, %21 : vector<1x2048xi32>
    %23 = arith.xori %18, %22 : vector<1x2048xi32>
    %c-1028477387_i32 = arith.constant -1028477387 : i32
    %24 = vector.broadcast %c-1028477387_i32 : i32 to vector<1x2048xi32>
    %25 = arith.muli %23, %24 : vector<1x2048xi32>
    %c16_i32_1 = arith.constant 16 : i32
    %26 = vector.broadcast %c16_i32_1 : i32 to vector<1x2048xi32>
    %27 = arith.shrsi %25, %26 : vector<1x2048xi32>
    %c65535_i32_2 = arith.constant 65535 : i32
    %28 = vector.broadcast %c65535_i32_2 : i32 to vector<1x2048xi32>
    %29 = arith.andi %27, %28 : vector<1x2048xi32>
    %30 = arith.xori %25, %29 : vector<1x2048xi32>
    %c-2147483648_i32 = arith.constant -2147483648 : i32
    %31 = vector.broadcast %c-2147483648_i32 : i32 to vector<1x2048xi32>
    %32 = arith.xori %30, %31 : vector<1x2048xi32>
    %c0_i32 = arith.constant 0 : i32
    %33 = vector.broadcast %c0_i32 : i32 to vector<1x2048xi32>
    %34 = arith.cmpi sge, %32, %33 : vector<1x2048xi32>
    %c0_3 = arith.constant 0 : index
    %c0_4 = arith.constant 0 : index
    %35 = vector.load %arg2[%c0_3, %c0_4] : memref<1x2048xf32, #tpu.memory_space<vmem>>, vector<1x2048xf32>
    %cst = arith.constant 2.000000e+00 : f32
    %36 = vector.broadcast %cst : f32 to vector<1x2048xf32>
    %37 = arith.mulf %35, %36 : vector<1x2048xf32>
    %cst_5 = arith.constant 0.000000e+00 : f32
    %38 = vector.broadcast %cst_5 : f32 to vector<1x2048xf32>
    %39 = arith.select %34, %37, %38 : vector<1x2048xi1>, vector<1x2048xf32>
    %c0_6 = arith.constant 0 : index
    %c0_7 = arith.constant 0 : index
    %40 = vector.load %arg3[%c0_6, %c0_7] : memref<1x2048xf32, #tpu.memory_space<vmem>>, vector<1x2048xf32>
    tpu.vector_store %arg3[%c0_6, %c0_7], %39 {strides = array<i32>} : memref<1x2048xf32, #tpu.memory_space<vmem>>, vector<1x2048xf32>,
    return
  }
  func.func @transform_0(%arg0: i32, %arg1: memref<1xi32, #tpu.memory_space<smem>>) -> (i32, i32) {
    %c0_i32 = arith.constant 0 : i32
    %c0_i32_0 = arith.constant 0 : i32
    return %arg0, %c0_i32 : i32, i32
  }
  func.func @transform_1(%arg0: i32, %arg1: memref<1xi32, #tpu.memory_space<smem>>) -> (i32, i32) {
    %c0_i32 = arith.constant 0 : i32
    %c0_i32_0 = arith.constant 0 : i32
    return %arg0, %c0_i32 : i32, i32
  }
}

</mosaic_0001>

<llo_original>
// kernel: tpu_custom_call.1
$region0: #{tpu_custom_call.1}
  #allocation0 [shape = 'u32[]', space=smem, size = 0x4, offset = 0x4, fixed_abs, tag = 'smem constant byte address 0x4 - core index']
  #allocation1 [shape = 'u32[72,128]{1,0:T(1,128)}', space=vmem, size = 0x9000, scoped, tag = 'internal scratch']
  #allocation2 [shape = 's32[1]{0}', space=sflag, size = 0x4, scoped, tag = 'scoped memory for tpu_custom_call.1']
  #allocation3 [shape = 's32[1]{0:T(128)S(6)}', space=smem, size = 0x200, scoped, tag = 'prefetched SMEM operand 0']
  %s0 = inlined_call_operand.<no memory space> [shape: s32[1], index: 0, kind: input, shape index: {}]
  %s1 = inlined_call_operand.hbm [shape: f32[1,2048], index: 1, kind: input, shape index: {}]
  %s2 = inlined_call_operand.hbm [shape: f32[1,2048], index: 2, kind: output, shape index: {}]
  %s3 = sld [smem:[#allocation0]]
  $region18: #{tpu_custom_call.1} parent=0
    _
  %s5 = ssub.s32 1, %s3
  %s6 = scalar_select 0, %s5, %s3
  %7 = sst [smem:[#allocation3]] %s0
  $region1: #{tpu_custom_call.1} parent=0
    #allocation4 [shape = 'u8[8192]{0}', space=vmem, size = 0x2000, scoped, tag = 'input window, operand 1, single buffered']
    #allocation5 [shape = 's32[1]{0}', space=sflag, size = 0x4, scoped, tag = 'scoped memory for tpu_custom_call.1']
    #allocation6 [shape = 's32[1]{0}', space=sflag, size = 0x4, scoped, tag = 'scoped memory for tpu_custom_call.1']
    #allocation7 [shape = 'u8[8192]{0}', space=vmem, size = 0x2000, scoped, tag = 'output window, operand 0, single buffered']
    %8 = vsyncpa [#allocation5], 0
    %9 = vsyncpa [#allocation6], 0
    // Predicated region
    $region2: #{tpu_custom_call.1} parent=1 // pred_check
      _
    $region3: #{tpu_custom_call.1} parent=1 // pred_check_branch
      %11 = sbr.rel (0) target = $region5
    $region4: #{tpu_custom_call.1} parent=1 // pred_region
      %13 = vsyncadd [#allocation5], 0
      %s15 = sshll.u32 %s1, 4
      %s16 = int_to_ptr.hbm [resolvable:$true] %s15
      %s17 = sshll.u32 [#allocation4], 4
      %s18 = int_to_ptr.vmem [resolvable:$true] %s17
      %20 = dma.hbm_to_vmem [thread:$0]  %s16, 256, %s18, [#allocation5]
    $region5: #{tpu_custom_call.1} parent=1 // pred_fallthru
      _
    // Predicated region
    $region6: #{tpu_custom_call.1} parent=1 // pred_check
      _
    $region7: #{tpu_custom_call.1} parent=1 // pred_check_branch
      %22 = sbr.rel (0) target = $region9
    $region8: #{tpu_custom_call.1} parent=1 // pred_region
      %24 = dma.done [#allocation5], 256
    $region9: #{tpu_custom_call.1} parent=1 // pred_fallthru
      _
    %s25 = smul.u32 0, 2048
    %v26 = vlaneseq
    %v27 = vshrl.u32 %v26, 7
    %v28 = vlaneseq
    %v29 = vand.u32 %v28, 127
    %v30 = vadd.s32 %v29, 128
    %v31 = vadd.s32 %v29, 256
    %v32 = vadd.s32 %v29, 384
    %v33 = vadd.s32 %v29, 512
    %v34 = vadd.s32 %v29, 640
    %v35 = vadd.s32 %v29, 768
    %v36 = vadd.s32 %v29, 896
    %v37 = vadd.s32 %v29, 1024
    %v38 = vadd.s32 %v29, 1152
    %v39 = vadd.s32 %v29, 1280
    %v40 = vadd.s32 %v29, 1408
    %v41 = vadd.s32 %v29, 1536
    %v42 = vadd.s32 %v29, 1664
    %v43 = vadd.s32 %v29, 1792
    %v44 = vadd.s32 %v29, 1920
    %v45 = vmul.u32 %v27, 2048
    %v46 = vstv %s25
    %v47 = vadd.s32 %v46, %v45
    %v48 = vadd.s32 %v47, %v29
    %v49 = vadd.s32 %v47, %v30
    %v50 = vadd.s32 %v47, %v31
    %v51 = vadd.s32 %v47, %v32
    %v52 = vadd.s32 %v47, %v33
    %v53 = vadd.s32 %v47, %v34
    %v54 = vadd.s32 %v47, %v35
    %v55 = vadd.s32 %v47, %v36
    %v56 = vadd.s32 %v47, %v37
    %v57 = vadd.s32 %v47, %v38
    %v58 = vadd.s32 %v47, %v39
    %v59 = vadd.s32 %v47, %v40
    %v60 = vadd.s32 %v47, %v41
    %v61 = vadd.s32 %v47, %v42
    %v62 = vadd.s32 %v47, %v43
    %v63 = vadd.s32 %v47, %v44
    %s64 = sld [smem:[#allocation3]]
    %s65 = smul.u32 %s64, 2654435769
    %v66 = vstv %s65
    %v67 = vxor.u32 %v48, %v66
    %v68 = vxor.u32 %v49, %v66
    %v69 = vxor.u32 %v50, %v66
    %v70 = vxor.u32 %v51, %v66
    %v71 = vxor.u32 %v52, %v66
    %v72 = vxor.u32 %v53, %v66
    %v73 = vxor.u32 %v54, %v66
    %v74 = vxor.u32 %v55, %v66
    %v75 = vxor.u32 %v56, %v66
    %v76 = vxor.u32 %v57, %v66
    %v77 = vxor.u32 %v58, %v66
    %v78 = vxor.u32 %v59, %v66
    %v79 = vxor.u32 %v60, %v66
    %v80 = vxor.u32 %v61, %v66
    %v81 = vxor.u32 %v62, %v66
    %v82 = vxor.u32 %v63, %v66
    %v83 = vshra.s32 %v67, 16
    %v84 = vshra.s32 %v68, 16
    %v85 = vshra.s32 %v69, 16
    %v86 = vshra.s32 %v70, 16
    %v87 = vshra.s32 %v71, 16
    %v88 = vshra.s32 %v72, 16
    %v89 = vshra.s32 %v73, 16
    %v90 = vshra.s32 %v74, 16
    %v91 = vshra.s32 %v75, 16
    %v92 = vshra.s32 %v76, 16
    %v93 = vshra.s32 %v77, 16
    %v94 = vshra.s32 %v78, 16
    %v95 = vshra.s32 %v79, 16
    %v96 = vshra.s32 %v80, 16
    %v97 = vshra.s32 %v81, 16
    %v98 = vshra.s32 %v82, 16
    %v99 = vand.u32 %v83, 65535
    %v100 = vand.u32 %v84, 65535
    %v101 = vand.u32 %v85, 65535
    %v102 = vand.u32 %v86, 65535
    %v103 = vand.u32 %v87, 65535
    %v104 = vand.u32 %v88, 65535
    %v105 = vand.u32 %v89, 65535
    %v106 = vand.u32 %v90, 65535
    %v107 = vand.u32 %v91, 65535
    %v108 = vand.u32 %v92, 65535
    %v109 = vand.u32 %v93, 65535
    %v110 = vand.u32 %v94, 65535
    %v111 = vand.u32 %v95, 65535
    %v112 = vand.u32 %v96, 65535
    %v113 = vand.u32 %v97, 65535
    %v114 = vand.u32 %v98, 65535
    %v115 = vxor.u32 %v67, %v99
    %v116 = vxor.u32 %v68, %v100
    %v117 = vxor.u32 %v69, %v101
    %v118 = vxor.u32 %v70, %v102
    %v119 = vxor.u32 %v71, %v103
    %v120 = vxor.u32 %v72, %v104
    %v121 = vxor.u32 %v73, %v105
    %v122 = vxor.u32 %v74, %v106
    %v123 = vxor.u32 %v75, %v107
    %v124 = vxor.u32 %v76, %v108
    %v125 = vxor.u32 %v77, %v109
    %v126 = vxor.u32 %v78, %v110
    %v127 = vxor.u32 %v79, %v111
    %v128 = vxor.u32 %v80, %v112
    %v129 = vxor.u32 %v81, %v113
    %v130 = vxor.u32 %v82, %v114
    %v131 = vmul.u32 %v115, 2246822507
    %v132 = vmul.u32 %v116, 2246822507
    %v133 = vmul.u32 %v117, 2246822507
    %v134 = vmul.u32 %v118, 2246822507
    %v135 = vmul.u32 %v119, 2246822507
    %v136 = vmul.u32 %v120, 2246822507
    %v137 = vmul.u32 %v121, 2246822507
    %v138 = vmul.u32 %v122, 2246822507
    %v139 = vmul.u32 %v123, 2246822507
    %v140 = vmul.u32 %v124, 2246822507
    %v141 = vmul.u32 %v125, 2246822507
    %v142 = vmul.u32 %v126, 2246822507
    %v143 = vmul.u32 %v127, 2246822507
    %v144 = vmul.u32 %v128, 2246822507
    %v145 = vmul.u32 %v129, 2246822507
    %v146 = vmul.u32 %v130, 2246822507
    %v147 = vshra.s32 %v131, 13
    %v148 = vshra.s32 %v132, 13
    %v149 = vshra.s32 %v133, 13
    %v150 = vshra.s32 %v134, 13
    %v151 = vshra.s32 %v135, 13
    %v152 = vshra.s32 %v136, 13
    %v153 = vshra.s32 %v137, 13
    %v154 = vshra.s32 %v138, 13
    %v155 = vshra.s32 %v139, 13
    %v156 = vshra.s32 %v140, 13
    %v157 = vshra.s32 %v141, 13
    %v158 = vshra.s32 %v142, 13
    %v159 = vshra.s32 %v143, 13
    %v160 = vshra.s32 %v144, 13
    %v161 = vshra.s32 %v145, 13
    %v162 = vshra.s32 %v146, 13
    %v163 = vand.u32 %v147, 524287
    %v164 = vand.u32 %v148, 524287
    %v165 = vand.u32 %v149, 524287
    %v166 = vand.u32 %v150, 524287
    %v167 = vand.u32 %v151, 524287
    %v168 = vand.u32 %v152, 524287
    %v169 = vand.u32 %v153, 524287
    %v170 = vand.u32 %v154, 524287
    %v171 = vand.u32 %v155, 524287
    %v172 = vand.u32 %v156, 524287
    %v173 = vand.u32 %v157, 524287
    %v174 = vand.u32 %v158, 524287
    %v175 = vand.u32 %v159, 524287
    %v176 = vand.u32 %v160, 524287
    %v177 = vand.u32 %v161, 524287
    %v178 = vand.u32 %v162, 524287
    %v179 = vxor.u32 %v131, %v163
    %v180 = vxor.u32 %v132, %v164
    %v181 = vxor.u32 %v133, %v165
    %v182 = vxor.u32 %v134, %v166
    %v183 = vxor.u32 %v135, %v167
    %v184 = vxor.u32 %v136, %v168
    %v185 = vxor.u32 %v137, %v169
    %v186 = vxor.u32 %v138, %v170
    %v187 = vxor.u32 %v139, %v171
    %v188 = vxor.u32 %v140, %v172
    %v189 = vxor.u32 %v141, %v173
    %v190 = vxor.u32 %v142, %v174
    %v191 = vxor.u32 %v143, %v175
    %v192 = vxor.u32 %v144, %v176
    %v193 = vxor.u32 %v145, %v177
    %v194 = vxor.u32 %v146, %v178
    %v195 = vmul.u32 %v179, 3266489909
    %v196 = vmul.u32 %v180, 3266489909
    %v197 = vmul.u32 %v181, 3266489909
    %v198 = vmul.u32 %v182, 3266489909
    %v199 = vmul.u32 %v183, 3266489909
    %v200 = vmul.u32 %v184, 3266489909
    %v201 = vmul.u32 %v185, 3266489909
    %v202 = vmul.u32 %v186, 3266489909
    %v203 = vmul.u32 %v187, 3266489909
    %v204 = vmul.u32 %v188, 3266489909
    %v205 = vmul.u32 %v189, 3266489909
    %v206 = vmul.u32 %v190, 3266489909
    %v207 = vmul.u32 %v191, 3266489909
    %v208 = vmul.u32 %v192, 3266489909
    %v209 = vmul.u32 %v193, 3266489909
    %v210 = vmul.u32 %v194, 3266489909
    %v211 = vshra.s32 %v195, 16
    %v212 = vshra.s32 %v196, 16
    %v213 = vshra.s32 %v197, 16
    %v214 = vshra.s32 %v198, 16
    %v215 = vshra.s32 %v199, 16
    %v216 = vshra.s32 %v200, 16
    %v217 = vshra.s32 %v201, 16
    %v218 = vshra.s32 %v202, 16
    %v219 = vshra.s32 %v203, 16
    %v220 = vshra.s32 %v204, 16
    %v221 = vshra.s32 %v205, 16
    %v222 = vshra.s32 %v206, 16
    %v223 = vshra.s32 %v207, 16
    %v224 = vshra.s32 %v208, 16
    %v225 = vshra.s32 %v209, 16
    %v226 = vshra.s32 %v210, 16
    %v227 = vand.u32 %v211, 65535
    %v228 = vand.u32 %v212, 65535
    %v229 = vand.u32 %v213, 65535
    %v230 = vand.u32 %v214, 65535
    %v231 = vand.u32 %v215, 65535
    %v232 = vand.u32 %v216, 65535
    %v233 = vand.u32 %v217, 65535
    %v234 = vand.u32 %v218, 65535
    %v235 = vand.u32 %v219, 65535
    %v236 = vand.u32 %v220, 65535
    %v237 = vand.u32 %v221, 65535
    %v238 = vand.u32 %v222, 65535
    %v239 = vand.u32 %v223, 65535
    %v240 = vand.u32 %v224, 65535
    %v241 = vand.u32 %v225, 65535
    %v242 = vand.u32 %v226, 65535
    %v243 = vxor.u32 %v195, %v227
    %v244 = vxor.u32 %v196, %v228
    %v245 = vxor.u32 %v197, %v229
    %v246 = vxor.u32 %v198, %v230
    %v247 = vxor.u32 %v199, %v231
    %v248 = vxor.u32 %v200, %v232
    %v249 = vxor.u32 %v201, %v233
    %v250 = vxor.u32 %v202, %v234
    %v251 = vxor.u32 %v203, %v235
    %v252 = vxor.u32 %v204, %v236
    %v253 = vxor.u32 %v205, %v237
    %v254 = vxor.u32 %v206, %v238
    %v255 = vxor.u32 %v207, %v239
    %v256 = vxor.u32 %v208, %v240
    %v257 = vxor.u32 %v209, %v241
    %v258 = vxor.u32 %v210, %v242
    %v259 = vxor.u32 %v243, 2147483648
    %v260 = vxor.u32 %v244, 2147483648
    %v261 = vxor.u32 %v245, 2147483648
    %v262 = vxor.u32 %v246, 2147483648
    %v263 = vxor.u32 %v247, 2147483648
    %v264 = vxor.u32 %v248, 2147483648
    %v265 = vxor.u32 %v249, 2147483648
    %v266 = vxor.u32 %v250, 2147483648
    %v267 = vxor.u32 %v251, 2147483648
    %v268 = vxor.u32 %v252, 2147483648
    %v269 = vxor.u32 %v253, 2147483648
    %v270 = vxor.u32 %v254, 2147483648
    %v271 = vxor.u32 %v255, 2147483648
    %v272 = vxor.u32 %v256, 2147483648
    %v273 = vxor.u32 %v257, 2147483648
    %v274 = vxor.u32 %v258, 2147483648
    %vm275 = vcmp.ge.s32.totalorder %v259, 0
    %vm276 = vcmp.ge.s32.totalorder %v260, 0
    %vm277 = vcmp.ge.s32.totalorder %v261, 0
    %vm278 = vcmp.ge.s32.totalorder %v262, 0
    %vm279 = vcmp.ge.s32.totalorder %v263, 0
    %vm280 = vcmp.ge.s32.totalorder %v264, 0
    %vm281 = vcmp.ge.s32.totalorder %v265, 0
    %vm282 = vcmp.ge.s32.totalorder %v266, 0
    %vm283 = vcmp.ge.s32.totalorder %v267, 0
    %vm284 = vcmp.ge.s32.totalorder %v268, 0
    %vm285 = vcmp.ge.s32.totalorder %v269, 0
    %vm286 = vcmp.ge.s32.totalorder %v270, 0
    %vm287 = vcmp.ge.s32.totalorder %v271, 0
    %vm288 = vcmp.ge.s32.totalorder %v272, 0
    %vm289 = vcmp.ge.s32.totalorder %v273, 0
    %vm290 = vcmp.ge.s32.totalorder %v274, 0
    %v291 = vld [vmem:[#allocation4] sm:$0xff]
    %v292 = vld [vmem:[#allocation4 + $0x8] sm:$0xff]
    %v293 = vmul.f32 %v291, 2.0
    %v294 = vmul.f32 %v292, 2.0
    %v297 = vperm.slane %v293, 0
    %v298 = vperm.slane %v293, 1
    %v299 = vperm.slane %v293, 2
    %v300 = vperm.slane %v293, 3
    %v301 = vperm.slane %v293, 4
    %v302 = vperm.slane %v293, 5
    %v303 = vperm.slane %v293, 6
    %v304 = vperm.slane %v293, 7
    %v305 = vperm.slane %v294, 0
    %v306 = vperm.slane %v294, 1
    %v307 = vperm.slane %v294, 2
    %v308 = vperm.slane %v294, 3
    %v309 = vperm.slane %v294, 4
    %v310 = vperm.slane %v294, 5
    %v311 = vperm.slane %v294, 6
    %v312 = vperm.slane %v294, 7
    %v329 = vsel %vm275, %v297, 0.0
    %v330 = vsel %vm276, %v298, 0.0
    %v331 = vsel %vm277, %v299, 0.0
    %v332 = vsel %vm278, %v300, 0.0
    %v333 = vsel %vm279, %v301, 0.0
    %v334 = vsel %vm280, %v302, 0.0
    %v335 = vsel %vm281, %v303, 0.0
    %v336 = vsel %vm282, %v304, 0.0
    %v337 = vsel %vm283, %v305, 0.0
    %v338 = vsel %vm284, %v306, 0.0
    %v339 = vsel %vm285, %v307, 0.0
    %v340 = vsel %vm286, %v308, 0.0
    %v341 = vsel %vm287, %v309, 0.0
    %v342 = vsel %vm288, %v310, 0.0
    %v343 = vsel %vm289, %v311, 0.0
    %v344 = vsel %vm290, %v312, 0.0
    %v361 = vrot.slane %v330, 7
    %v362 = vrot.slane %v331, 6
    %v363 = vrot.slane %v332, 5
    %v364 = vrot.slane %v333, 4
    %v365 = vrot.slane %v334, 3
    %v366 = vrot.slane %v335, 2
    %v367 = vrot.slane %v336, 1
    %v368 = vrot.slane %v338, 7
    %v369 = vrot.slane %v339, 6
    %v370 = vrot.slane %v340, 5
    %v371 = vrot.slane %v341, 4
    %v372 = vrot.slane %v342, 3
    %v373 = vrot.slane %v343, 2
    %v374 = vrot.slane %v344, 1
    %vm375 = vcmask 1040384
    %v376 = vsel %vm375, %v329, %v361
    %vm377 = vcmask 1042434
    %v378 = vsel %vm377, %v362, %v363
    %vm379 = vcmask 1041408
    %v380 = vsel %vm379, %v376, %v378
    %vm381 = vcmask 1044484
    %v382 = vsel %vm381, %v364, %v365
    %vm383 = vcmask 1046534
    %v384 = vsel %vm383, %v366, %v367
    %vm385 = vcmask 1045508
    %v386 = vsel %vm385, %v382, %v384
    %vm387 = vcmask 1043456
    %v388 = vsel %vm387, %v380, %v386
    %v389 = vsel %vm375, %v337, %v368
    %v390 = vsel %vm377, %v369, %v370
    %v391 = vsel %vm379, %v389, %v390
    %v392 = vsel %vm381, %v371, %v372
    %v393 = vsel %vm383, %v373, %v374
    %v394 = vsel %vm385, %v392, %v393
    %v395 = vsel %vm387, %v391, %v394
    %398 = vst [vmem:[#allocation7] sm:$0xff] %v388
    %399 = vst [vmem:[#allocation7 + $0x8] sm:$0xff] %v395
    // Predicated region
    $region10: #{tpu_custom_call.1} parent=1 // pred_check
      _
    $region11: #{tpu_custom_call.1} parent=1 // pred_check_branch
      %401 = sbr.rel (0) target = $region13
    $region12: #{tpu_custom_call.1} parent=1 // pred_region
      %403 = vsyncadd [#allocation6], 0
      %s405 = sshll.u32 [#allocation7], 4
      %s406 = int_to_ptr.vmem [resolvable:$true] %s405
      %s407 = sshll.u32 %s2, 4
      %s408 = int_to_ptr.hbm [resolvable:$true] %s407
      %410 = dma.vmem_to_hbm [thread:$0]  %s406, 256, %s408, [#allocation6]
    $region13: #{tpu_custom_call.1} parent=1 // pred_fallthru
      _
    // Predicated region
    $region14: #{tpu_custom_call.1} parent=1 // pred_check
      _
    $region15: #{tpu_custom_call.1} parent=1 // pred_check_branch
      %412 = sbr.rel (0) target = $region17
    $region16: #{tpu_custom_call.1} parent=1 // pred_region
      %414 = dma.done [#allocation6], 256
    $region17: #{tpu_custom_call.1} parent=1 // pred_fallthru
      _
    %415 = vsyncpa [#allocation5], 1
    %416 = vsyncpa [#allocation6], 1

</llo_original>
